<compile_context>
chip_gen: v6e
topology: v6e:2x2x1
jax: 0.10.0
libtpu: 0.0.40
codegen_flags: <defaults>
</compile_context>

<pallas_src>
import functools

import jax
import jax.numpy as jnp
from jax.experimental import pallas as pl
from jax.experimental.pallas import tpu as pltpu

_HEAD_PAD = 128  # lane-aligned column offset of the log-sigma head in the fused matmul


def _round_up(n, m):
    return ((n + m - 1) // m) * m


def _vae_encoder_kernel(x_ref, w1_ref, b1_ref, w2_ref, b2_ref,
                        w34_ref, b34_ref, eps_ref, z_ref, kl_ref,
                        *, latent_dims, block_b, valid_rows):
    L = latent_dims

    # linear1 + relu : (TB,256) @ (256,128) -> (TB,128)   (bf16 MXU, f32 acc)
    x = x_ref[...].astype(jnp.bfloat16)
    h1 = jnp.dot(x, w1_ref[...], preferred_element_type=jnp.float32) + b1_ref[...]
    h1 = jnp.maximum(h1, 0.0).astype(jnp.bfloat16)

    # linear2 + relu : (TB,128) @ (128,64) -> (TB,64)
    h2 = jnp.dot(h1, w2_ref[...], preferred_element_type=jnp.float32) + b2_ref[...]
    h2 = jnp.maximum(h2, 0.0).astype(jnp.bfloat16)

    # fused, lane-aligned heads : (TB,64) @ (64,256) -> (TB,256)
    #   columns [0:L]                     -> mu
    #   columns [_HEAD_PAD:_HEAD_PAD + L] -> log_sigma (starts on a vreg lane
    #   boundary, so it lines up with mu / eps without XLU lane shuffles)
    heads = jnp.dot(h2, w34_ref[...], preferred_element_type=jnp.float32) + b34_ref[...]
    mu = heads[:, :L]
    log_sigma = heads[:, _HEAD_PAD:_HEAD_PAD + L]
    sigma = jnp.exp(log_sigma)

    # reparameterization: z = mu + sigma * eps   (eps ~ N(0,1), sampled outside)
    z_ref[...] = (mu + sigma * eps_ref[...]).astype(z_ref.dtype)

    # partial KL for this batch tile (log_sigma used directly, no exp->log):
    #   kl = sum(sigma^2 + mu^2 - log(sigma) - 1/2)
    kl_rows = jnp.sum(sigma * sigma + mu * mu - log_sigma - 0.5,
                      axis=1, keepdims=True)
    if valid_rows is not None:  # mask rows added by batch padding
        row = (pl.program_id(0) * block_b
               + jax.lax.broadcasted_iota(jnp.int32, kl_rows.shape, 0))
        kl_rows = jnp.where(row < valid_rows, kl_rows, 0.0)
    kl_ref[0, 0] = jnp.sum(kl_rows)


def _pick_block_b(B, target=2048):
    """Batch tile: multiple of 8, <= target; split a single full-batch tile in
    two when possible so both v7x TensorCores get work (no effect on v5e/v6e)."""
    tb = min(_round_up(B, 8), target)
    if B <= tb and B >= 16:
        tb = _round_up((B + 1) // 2, 8)
    return max(tb, 8)


def variational_encoder(x, params, eps, *, block_b=None):
    """VariationalEncoder forward. Returns (z, kl).

    x may be f32 or bf16 (bf16 preferred if it can be produced/fused upstream —
    it halves the dominant HBM read; the in-kernel cast is then a no-op)."""
    B, D_in = x.shape
    L = eps.shape[1]
    assert L <= _HEAD_PAD, "latent_dims > 128 needs a wider head pad"

    # bf16 weights (f32 biases, f32 MXU accumulation); heads fused + lane-padded.
    w1 = params["w1"].astype(jnp.bfloat16)
    w2 = params["w2"].astype(jnp.bfloat16)
    b1, b2 = params["b1"], params["b2"]
    w34 = jnp.zeros((params["w3"].shape[0], 2 * _HEAD_PAD), jnp.float32)
    w34 = w34.at[:, :L].set(params["w3"])
    w34 = w34.at[:, _HEAD_PAD:_HEAD_PAD + L].set(params["w4"])
    w34 = w34.astype(jnp.bfloat16)
    b34 = jnp.zeros((1, 2 * _HEAD_PAD), jnp.float32)
    b34 = b34.at[:, :L].set(params["b3"])
    b34 = b34.at[:, _HEAD_PAD:_HEAD_PAD + L].set(params["b4"])

    if block_b is None:
        block_b = _pick_block_b(B)
    num_steps = pl.cdiv(B, block_b)
    B_pad = num_steps * block_b
    if B_pad != B:
        x = jnp.pad(x, ((0, B_pad - B), (0, 0)))
        eps = jnp.pad(eps, ((0, B_pad - B), (0, 0)))
        valid_rows = B
    else:
        valid_rows = None

    kernel = functools.partial(_vae_encoder_kernel, latent_dims=L,
                               block_b=block_b, valid_rows=valid_rows)

    resident = lambda shape: pl.BlockSpec(shape, lambda i: (0, 0))

    z, kl_parts = pl.pallas_call(
        kernel,
        out_shape=(
            jax.ShapeDtypeStruct((B_pad, L), jnp.float32),
            jax.ShapeDtypeStruct((num_steps, 1), jnp.float32),
        ),
        grid=(num_steps,),
        in_specs=[
            pl.BlockSpec((block_b, D_in), lambda i: (i, 0)),      # x
            resident(w1.shape), resident(b1.shape),               # linear1
            resident(w2.shape), resident(b2.shape),               # linear2
            resident(w34.shape), resident(b34.shape),             # fused heads
            pl.BlockSpec((block_b, L), lambda i: (i, 0)),         # eps
        ],
        out_specs=(
            pl.BlockSpec((block_b, L), lambda i: (i, 0)),                      # z
            pl.BlockSpec((1, 1), lambda i: (i, 0),
                         memory_space=pltpu.MemorySpace.SMEM),                 # kl partial
        ),
        compiler_params=pltpu.CompilerParams(
            dimension_semantics=("parallel",),
            vmem_limit_bytes=32 * 1024 * 1024,
        ),
    )(x, w1, b1, w2, b2, w34, b34, eps)

    if B_pad != B:
        z = z[:B]
    return z, jnp.sum(kl_parts)


def init_params(key, latent_dims):
    """Deterministic synthetic parameters (same shapes as the nn.Module)."""
    dims = [(256, 128), (128, 64), (64, latent_dims), (64, latent_dims)]
    params = {}
    for i, (fan_in, fan_out) in enumerate(dims, start=1):
        key, kw, kb = jax.random.split(key, 3)
        bound = 1.0 / jnp.sqrt(fan_in)
        # stored as (in, out) == PyTorch weight (out, in) transposed
        params[f"w{i}"] = jax.random.uniform(
            kw, (fan_in, fan_out), jnp.float32, -bound, bound)
        params[f"b{i}"] = jax.random.uniform(
            kb, (1, fan_out), jnp.float32, -bound, bound)
    return params


def _reference(x, params, eps):
    """Plain-JAX reference mirroring the kernel's bf16-matmul / f32-acc math."""
    bf = jnp.bfloat16
    h1 = jnp.maximum(jnp.dot(x.astype(bf), params["w1"].astype(bf),
                             preferred_element_type=jnp.float32) + params["b1"], 0.0)
    h2 = jnp.maximum(jnp.dot(h1.astype(bf), params["w2"].astype(bf),
                             preferred_element_type=jnp.float32) + params["b2"], 0.0)
    mu = jnp.dot(h2.astype(bf), params["w3"].astype(bf),
                 preferred_element_type=jnp.float32) + params["b3"]
    log_sigma = jnp.dot(h2.astype(bf), params["w4"].astype(bf),
                        preferred_element_type=jnp.float32) + params["b4"]
    sigma = jnp.exp(log_sigma)
    z = mu + sigma * eps
    kl = jnp.sum(sigma ** 2 + mu ** 2 - log_sigma - 0.5)
    return z, kl


if __name__ == "__main__":
    latent_dims = 16
    key = jax.random.PRNGKey(0)
    key, kp = jax.random.split(key)
    params = init_params(kp, latent_dims)

    # --- small run (batch divides the tile exactly) -------------------------
    batch = 8
    key, kx, keps = jax.random.split(key, 3)
    x = jax.random.normal(kx, (batch, 256), jnp.float32)
    eps = jax.random.normal(keps, (batch, latent_dims), jnp.float32)  # N(0,1)

    z, kl = variational_encoder(x, params, eps)
    jax.block_until_ready((z, kl))

    z_ref, kl_ref = _reference(x, params, eps)
    assert jnp.allclose(z, z_ref, atol=1e-2, rtol=1e-2), (
        float(jnp.max(jnp.abs(z - z_ref))))
    assert jnp.allclose(kl, kl_ref, atol=1e-1, rtol=1e-2), (float(kl), float(kl_ref))

    # --- ragged batch (exercises cdiv grid + padding + KL row masking) ------
    batch2 = 20
    key, kx2, keps2 = jax.random.split(key, 3)
    x2 = jax.random.normal(kx2, (batch2, 256), jnp.float32)
    eps2 = jax.random.normal(keps2, (batch2, latent_dims), jnp.float32)

    z2, kl2 = variational_encoder(x2, params, eps2)
    jax.block_until_ready((z2, kl2))

    z2_ref, kl2_ref = _reference(x2, params, eps2)
    assert z2.shape == (batch2, latent_dims)
    assert jnp.allclose(z2, z2_ref, atol=1e-2, rtol=1e-2), (
        float(jnp.max(jnp.abs(z2 - z2_ref))))
    assert jnp.allclose(kl2, kl2_ref, atol=1e-1, rtol=1e-2), (
        float(kl2), float(kl2_ref))

    print("KERNEL_OK")
</pallas_src>

<mosaic_0001>
module attributes {stable_mosaic.version = 11 : i64} {
  func.func @_vae_encoder_kernel(%arg0: i32, %arg1: memref<8x256xf32, #tpu.memory_space<vmem>>, %arg2: memref<256x128xbf16, #tpu.memory_space<vmem>>, %arg3: memref<1x128xf32, #tpu.memory_space<vmem>>, %arg4: memref<128x64xbf16, #tpu.memory_space<vmem>>, %arg5: memref<1x64xf32, #tpu.memory_space<vmem>>, %arg6: memref<64x256xbf16, #tpu.memory_space<vmem>>, %arg7: memref<1x256xf32, #tpu.memory_space<vmem>>, %arg8: memref<8x16xf32, #tpu.memory_space<vmem>>, %arg9: memref<8x16xf32, #tpu.memory_space<vmem>>, %arg10: memref<1x1xf32, #tpu.memory_space<smem>>) attributes {dimension_semantics = [#tpu.dimension_semantics<parallel>], iteration_bounds = array<i64: 1>, scalar_prefetch = 0 : i64, scratch_operands = 0 : i64, tpu.core_type = #tpu.core_type<tc>, window_params = [{transform_indices = @transform_0, window_bounds = array<i64: 8, 256>}, {pipeline_mode = #tpu.pipeline_mode<synchronous>, transform_indices = @transform_1, window_bounds = array<i64: 256, 128>}, {pipeline_mode = #tpu.pipeline_mode<synchronous>, transform_indices = @transform_2, window_bounds = array<i64: 1, 128>}, {pipeline_mode = #tpu.pipeline_mode<synchronous>, transform_indices = @transform_3, window_bounds = array<i64: 128, 64>}, {pipeline_mode = #tpu.pipeline_mode<synchronous>, transform_indices = @transform_4, window_bounds = array<i64: 1, 64>}, {pipeline_mode = #tpu.pipeline_mode<synchronous>, transform_indices = @transform_5, window_bounds = array<i64: 64, 256>}, {pipeline_mode = #tpu.pipeline_mode<synchronous>, transform_indices = @transform_6, window_bounds = array<i64: 1, 256>}, {transform_indices = @transform_7, window_bounds = array<i64: 8, 16>}, {transform_indices = @transform_8, window_bounds = array<i64: 8, 16>}, {transform_indices = @transform_9, window_bounds = array<i64: 1, 1>}]} {
    %c0 = arith.constant 0 : index
    %c0_0 = arith.constant 0 : index
    %0 = vector.load %arg1[%c0, %c0_0] : memref<8x256xf32, #tpu.memory_space<vmem>>, vector<8x256xf32>
    %1 = arith.truncf %0 : vector<8x256xf32> to vector<8x256xbf16>
    %c0_1 = arith.constant 0 : index
    %c0_2 = arith.constant 0 : index
    %2 = vector.load %arg2[%c0_1, %c0_2] : memref<256x128xbf16, #tpu.memory_space<vmem>>, vector<256x128xbf16>
    %cst = arith.constant dense<0.000000e+00> : vector<8x128xf32>
    %3 = tpu.matmul %1, %2, %cst {dimension_numbers = #tpu.dot_dimension_numbers<[1], [0], [0], [1], [0, 0, 1, 1], [], []>} : vector<8x256xbf16>, vector<256x128xbf16>, vector<8x128xf32> -> vector<8x128xf32>
    %c0_3 = arith.constant 0 : index
    %c0_4 = arith.constant 0 : index
    %4 = vector.load %arg3[%c0_3, %c0_4] : memref<1x128xf32, #tpu.memory_space<vmem>>, vector<1x128xf32>
    %5 = vector.broadcast %4 : vector<1x128xf32> to vector<8x128xf32>
    %6 = arith.addf %3, %5 : vector<8x128xf32>
    %cst_5 = arith.constant 0.000000e+00 : f32
    %7 = vector.broadcast %cst_5 : f32 to vector<8x128xf32>
    %8 = arith.maximumf %6, %7 : vector<8x128xf32>
    %9 = arith.truncf %8 : vector<8x128xf32> to vector<8x128xbf16>
    %c0_6 = arith.constant 0 : index
    %c0_7 = arith.constant 0 : index
    %10 = vector.load %arg4[%c0_6, %c0_7] : memref<128x64xbf16, #tpu.memory_space<vmem>>, vector<128x64xbf16>
    %cst_8 = arith.constant dense<0.000000e+00> : vector<8x64xf32>
    %11 = tpu.matmul %9, %10, %cst_8 {dimension_numbers = #tpu.dot_dimension_numbers<[1], [0], [0], [1], [0, 0, 1, 1], [], []>} : vector<8x128xbf16>, vector<128x64xbf16>, vector<8x64xf32> -> vector<8x64xf32>
    %c0_9 = arith.constant 0 : index
    %c0_10 = arith.constant 0 : index
    %12 = vector.load %arg5[%c0_9, %c0_10] : memref<1x64xf32, #tpu.memory_space<vmem>>, vector<1x64xf32>
    %13 = vector.broadcast %12 : vector<1x64xf32> to vector<8x64xf32>
    %14 = arith.addf %11, %13 : vector<8x64xf32>
    %cst_11 = arith.constant 0.000000e+00 : f32
    %15 = vector.broadcast %cst_11 : f32 to vector<8x64xf32>
    %16 = arith.maximumf %14, %15 : vector<8x64xf32>
    %17 = arith.truncf %16 : vector<8x64xf32> to vector<8x64xbf16>
    %c0_12 = arith.constant 0 : index
    %c0_13 = arith.constant 0 : index
    %18 = vector.load %arg6[%c0_12, %c0_13] : memref<64x256xbf16, #tpu.memory_space<vmem>>, vector<64x256xbf16>
    %cst_14 = arith.constant dense<0.000000e+00> : vector<8x256xf32>
    %19 = tpu.matmul %17, %18, %cst_14 {dimension_numbers = #tpu.dot_dimension_numbers<[1], [0], [0], [1], [0, 0, 1, 1], [], []>} : vector<8x64xbf16>, vector<64x256xbf16>, vector<8x256xf32> -> vector<8x256xf32>
    %c0_15 = arith.constant 0 : index
    %c0_16 = arith.constant 0 : index
    %20 = vector.load %arg7[%c0_15, %c0_16] : memref<1x256xf32, #tpu.memory_space<vmem>>, vector<1x256xf32>
    %21 = vector.broadcast %20 : vector<1x256xf32> to vector<8x256xf32>
    %22 = arith.addf %19, %21 : vector<8x256xf32>
    %23 = vector.extract_strided_slice %22 {offsets = [0, 0], sizes = [8, 16], strides = [1, 1]} : vector<8x256xf32> to vector<8x16xf32>
    %24 = vector.extract_strided_slice %22 {offsets = [0, 128], sizes = [8, 16], strides = [1, 1]} : vector<8x256xf32> to vector<8x16xf32>
    %25 = math.exp %24 : vector<8x16xf32>
    %c0_17 = arith.constant 0 : index
    %c0_18 = arith.constant 0 : index
    %26 = vector.load %arg8[%c0_17, %c0_18] : memref<8x16xf32, #tpu.memory_space<vmem>>, vector<8x16xf32>
    %27 = arith.mulf %25, %26 : vector<8x16xf32>
    %28 = arith.addf %23, %27 : vector<8x16xf32>
    %c0_19 = arith.constant 0 : index
    %c0_20 = arith.constant 0 : index
    %29 = vector.load %arg9[%c0_19, %c0_20] : memref<8x16xf32, #tpu.memory_space<vmem>>, vector<8x16xf32>
    tpu.vector_store %arg9[%c0_19, %c0_20], %28 {strides = array<i32>} : memref<8x16xf32, #tpu.memory_space<vmem>>, vector<8x16xf32>,
    %30 = arith.mulf %25, %25 : vector<8x16xf32>
    %31 = arith.mulf %23, %23 : vector<8x16xf32>
    %32 = arith.addf %30, %31 : vector<8x16xf32>
    %33 = arith.subf %32, %24 : vector<8x16xf32>
    %cst_21 = arith.constant 5.000000e-01 : f32
    %34 = vector.broadcast %cst_21 : f32 to vector<8x16xf32>
    %35 = arith.subf %33, %34 : vector<8x16xf32>
    %cst_22 = arith.constant dense<0.000000e+00> : vector<8xf32>
    %36 = vector.multi_reduction <add>, %35, %cst_22 [1] : vector<8x16xf32> to vector<8xf32>
    %37 = vector.shape_cast %36 : vector<8xf32> to vector<8x1xf32>
    %38 = vector.shape_cast %37 : vector<8x1xf32> to vector<1x8x1xf32>
    %cst_23 = arith.constant dense<0.000000e+00> : vector<1xf32>
    %39 = vector.multi_reduction <add>, %38, %cst_23 [1, 2] : vector<1x8x1xf32> to vector<1xf32>
    %40 = vector.shape_cast %39 : vector<1xf32> to vector<1x1x1xf32>
    %41 = vector.extract %40[0, 0, 0] : f32 from vector<1x1x1xf32>
    %c0_24 = arith.constant 0 : index
    %c0_25 = arith.constant 0 : index
    %42 = memref.load %arg10[%c0_24, %c0_25] : memref<1x1xf32, #tpu.memory_space<smem>>
    memref.store %41, %arg10[%c0_24, %c0_25] : memref<1x1xf32, #tpu.memory_space<smem>>
    return
  }
  func.func @transform_0(%arg0: i32) -> (i32, i32) {
    %c0_i32 = arith.constant 0 : i32
    %c0_i32_0 = arith.constant 0 : i32
    return %arg0, %c0_i32 : i32, i32
  }
  func.func @transform_1(%arg0: i32) -> (i32, i32) {
    %c0_i32 = arith.constant 0 : i32
    %c0_i32_0 = arith.constant 0 : i32
    %c0_i32_1 = arith.constant 0 : i32
    return %c0_i32, %c0_i32_0 : i32, i32
  }
  func.func @transform_2(%arg0: i32) -> (i32, i32) {
    %c0_i32 = arith.constant 0 : i32
    %c0_i32_0 = arith.constant 0 : i32
    %c0_i32_1 = arith.constant 0 : i32
    return %c0_i32, %c0_i32_0 : i32, i32
  }
  func.func @transform_3(%arg0: i32) -> (i32, i32) {
    %c0_i32 = arith.constant 0 : i32
    %c0_i32_0 = arith.constant 0 : i32
    %c0_i32_1 = arith.constant 0 : i32
    return %c0_i32, %c0_i32_0 : i32, i32
  }
  func.func @transform_4(%arg0: i32) -> (i32, i32) {
    %c0_i32 = arith.constant 0 : i32
    %c0_i32_0 = arith.constant 0 : i32
    %c0_i32_1 = arith.constant 0 : i32
    return %c0_i32, %c0_i32_0 : i32, i32
  }
  func.func @transform_5(%arg0: i32) -> (i32, i32) {
    %c0_i32 = arith.constant 0 : i32
    %c0_i32_0 = arith.constant 0 : i32
    %c0_i32_1 = arith.constant 0 : i32
    return %c0_i32, %c0_i32_0 : i32, i32
  }
  func.func @transform_6(%arg0: i32) -> (i32, i32) {
    %c0_i32 = arith.constant 0 : i32
    %c0_i32_0 = arith.constant 0 : i32
    %c0_i32_1 = arith.constant 0 : i32
    return %c0_i32, %c0_i32_0 : i32, i32
  }
  func.func @transform_7(%arg0: i32) -> (i32, i32) {
    %c0_i32 = arith.constant 0 : i32
    %c0_i32_0 = arith.constant 0 : i32
    return %arg0, %c0_i32 : i32, i32
  }
  func.func @transform_8(%arg0: i32) -> (i32, i32) {
    %c0_i32 = arith.constant 0 : i32
    %c0_i32_0 = arith.constant 0 : i32
    return %arg0, %c0_i32 : i32, i32
  }
  func.func @transform_9(%arg0: i32) -> (i32, i32) {
    %c0_i32 = arith.constant 0 : i32
    %c0_i32_0 = arith.constant 0 : i32
    return %arg0, %c0_i32 : i32, i32
  }
}

</mosaic_0001>

<llo_original>
// kernel: tpu_custom_call.1
$region0: #{tpu_custom_call.1}
  #allocation0 [shape = 'u32[]', space=smem, size = 0x4, offset = 0x4, fixed_abs, tag = 'smem constant byte address 0x4 - core index']
  #allocation1 [shape = 'u32[144,128]{1,0:T(1,128)}', space=vmem, size = 0x12000, scoped, tag = 'internal scratch']
  %s0 = inlined_call_operand.vmem [shape: f32[8,256], index: 0, kind: input, shape index: {}]
  %s1 = inlined_call_operand.hbm [shape: bf16[256,128], index: 1, kind: input, shape index: {}]
  %s2 = inlined_call_operand.vmem [shape: f32[1,128], index: 2, kind: input, shape index: {}]
  %s3 = inlined_call_operand.vmem [shape: bf16[128,64], index: 3, kind: input, shape index: {}]
  %s4 = inlined_call_operand.vmem [shape: f32[1,64], index: 4, kind: input, shape index: {}]
  %s5 = inlined_call_operand.vmem [shape: bf16[64,256], index: 5, kind: input, shape index: {}]
  %s6 = inlined_call_operand.vmem [shape: f32[1,256], index: 6, kind: input, shape index: {}]
  %s7 = inlined_call_operand.vmem [shape: f32[8,16], index: 7, kind: input, shape index: {}]
  %s8 = inlined_call_operand.hbm [shape: f32[8,16], index: 8, kind: output, shape index: {0}]
  %s9 = inlined_call_operand.hbm [shape: f32[1,1], index: 9, kind: output, shape index: {1}]
  %10 = xla_tuple %s8, %s9
  %s11 = sld [smem:[#allocation0]]
  $region54: #{tpu_custom_call.1} parent=0
    _
  %s13 = ssub.s32 1, %s11
  %s14 = scalar_select 0, %s13, %s11
  $region1: #{tpu_custom_call.1} parent=0
    #allocation2 [shape = 'u8[65536]{0}', space=vmem, size = 0x10000, scoped, tag = 'input window, operand 1, single buffered']
    #allocation3 [shape = 's32[1]{0}', space=sflag, size = 0x4, scoped, tag = 'scoped memory for tpu_custom_call.1']
    #allocation4 [shape = 's32[1]{0}', space=sflag, size = 0x4, scoped, tag = 'scoped memory for tpu_custom_call.1']
    #allocation5 [shape = 's32[1]{0}', space=sflag, size = 0x4, scoped, tag = 'scoped memory for tpu_custom_call.1']
    #allocation6 [shape = 'u8[4096]{0}', space=vmem, size = 0x1000, scoped, tag = 'output window, operand 0, single buffered']
    #allocation7 [shape = 'u8[512]{0}', space=smem, size = 0x200, scoped, tag = 'output window, operand 1, single buffered']
    %15 = vsyncpa [#allocation3], 0
    %16 = vsyncpa [#allocation4], 0
    %17 = vsyncpa [#allocation5], 0
    // Predicated region
    $region2: #{tpu_custom_call.1} parent=1 // pred_check
      _
    $region3: #{tpu_custom_call.1} parent=1 // pred_check_branch
      %19 = sbr.rel (0) target = $region5
    $region4: #{tpu_custom_call.1} parent=1 // pred_region
      _
    $region5: #{tpu_custom_call.1} parent=1 // pred_fallthru
      _
    // Predicated region
    $region6: #{tpu_custom_call.1} parent=1 // pred_check
      _
    $region7: #{tpu_custom_call.1} parent=1 // pred_check_branch
      %21 = sbr.rel (0) target = $region9
    $region8: #{tpu_custom_call.1} parent=1 // pred_region
      %s23 = ssub.s32 2048, 2048
      %24 = vsyncadd [#allocation3], %s23
      %s25 = sshll.u32 [#allocation2], 4
      %s26 = int_to_ptr.vmem [resolvable:$true] %s25
      %31 = dma.hbm_to_vmem [thread:$0]  %s1, 2048, %s26, [#allocation3], 64, 64, 4
    $region9: #{tpu_custom_call.1} parent=1 // pred_fallthru
      _
    // Predicated region
    $region10: #{tpu_custom_call.1} parent=1 // pred_check
      _
    $region11: #{tpu_custom_call.1} parent=1 // pred_check_branch
      %33 = sbr.rel (0) target = $region13
    $region12: #{tpu_custom_call.1} parent=1 // pred_region
      _
    $region13: #{tpu_custom_call.1} parent=1 // pred_fallthru
      _
    // Predicated region
    $region14: #{tpu_custom_call.1} parent=1 // pred_check
      _
    $region15: #{tpu_custom_call.1} parent=1 // pred_check_branch
      %35 = sbr.rel (0) target = $region17
    $region16: #{tpu_custom_call.1} parent=1 // pred_region
      _
    $region17: #{tpu_custom_call.1} parent=1 // pred_fallthru
      _
    // Predicated region
    $region18: #{tpu_custom_call.1} parent=1 // pred_check
      _
    $region19: #{tpu_custom_call.1} parent=1 // pred_check_branch
      %37 = sbr.rel (0) target = $region21
    $region20: #{tpu_custom_call.1} parent=1 // pred_region
      _
    $region21: #{tpu_custom_call.1} parent=1 // pred_fallthru
      _
    // Predicated region
    $region22: #{tpu_custom_call.1} parent=1 // pred_check
      _
    $region23: #{tpu_custom_call.1} parent=1 // pred_check_branch
      %39 = sbr.rel (0) target = $region25
    $region24: #{tpu_custom_call.1} parent=1 // pred_region
      _
    $region25: #{tpu_custom_call.1} parent=1 // pred_fallthru
      _
    // Predicated region
    $region26: #{tpu_custom_call.1} parent=1 // pred_check
      _
    $region27: #{tpu_custom_call.1} parent=1 // pred_check_branch
      %41 = sbr.rel (0) target = $region29
    $region28: #{tpu_custom_call.1} parent=1 // pred_region
      _
    $region29: #{tpu_custom_call.1} parent=1 // pred_fallthru
      _
    // Predicated region
    $region30: #{tpu_custom_call.1} parent=1 // pred_check
      _
    $region31: #{tpu_custom_call.1} parent=1 // pred_check_branch
      %43 = sbr.rel (0) target = $region33
    $region32: #{tpu_custom_call.1} parent=1 // pred_region
      _
    $region33: #{tpu_custom_call.1} parent=1 // pred_fallthru
      _
    // Predicated region
    $region34: #{tpu_custom_call.1} parent=1 // pred_check
      _
    $region35: #{tpu_custom_call.1} parent=1 // pred_check_branch
      %45 = sbr.rel (0) target = $region37
    $region36: #{tpu_custom_call.1} parent=1 // pred_region
      %46 = dma.done [#allocation3], 2048
    $region37: #{tpu_custom_call.1} parent=1 // pred_fallthru
      _
    %v48 = vld [vmem:[%s0] sm:$0xff]
    %v49 = vld [vmem:[%s0 + $0x8] sm:$0xff]
    %v50 = vpack.c.bf16 %v48, %v48
    %v51 = vpack.c.bf16 %v49, %v49
    %v52 = vld [vmem:[#allocation2] sm:$0xf]
    %v53 = vld [vmem:[#allocation2 + $0x4] sm:$0xf]
    %v54 = vld [vmem:[#allocation2 + $0x8] sm:$0xf]
    %v55 = vld [vmem:[#allocation2 + $0xc] sm:$0xf]
    %v56 = vld [vmem:[#allocation2 + $0x10] sm:$0xf]
    %v57 = vld [vmem:[#allocation2 + $0x14] sm:$0xf]
    %v58 = vld [vmem:[#allocation2 + $0x18] sm:$0xf]
    %v59 = vld [vmem:[#allocation2 + $0x1c] sm:$0xf]
    %v60 = vld [vmem:[#allocation2 + $0x20] sm:$0xf]
    %v61 = vld [vmem:[#allocation2 + $0x24] sm:$0xf]
    %v62 = vld [vmem:[#allocation2 + $0x28] sm:$0xf]
    %v63 = vld [vmem:[#allocation2 + $0x2c] sm:$0xf]
    %v64 = vld [vmem:[#allocation2 + $0x30] sm:$0xf]
    %v65 = vld [vmem:[#allocation2 + $0x34] sm:$0xf]
    %v66 = vld [vmem:[#allocation2 + $0x38] sm:$0xf]
    %v67 = vld [vmem:[#allocation2 + $0x3c] sm:$0xf]
    %v68 = vld [vmem:[#allocation2 + $0x40] sm:$0xf]
    %v69 = vld [vmem:[#allocation2 + $0x44] sm:$0xf]
    %v70 = vld [vmem:[#allocation2 + $0x48] sm:$0xf]
    %v71 = vld [vmem:[#allocation2 + $0x4c] sm:$0xf]
    %v72 = vld [vmem:[#allocation2 + $0x50] sm:$0xf]
    %v73 = vld [vmem:[#allocation2 + $0x54] sm:$0xf]
    %v74 = vld [vmem:[#allocation2 + $0x58] sm:$0xf]
    %v75 = vld [vmem:[#allocation2 + $0x5c] sm:$0xf]
    %v76 = vld [vmem:[#allocation2 + $0x60] sm:$0xf]
    %v77 = vld [vmem:[#allocation2 + $0x64] sm:$0xf]
    %v78 = vld [vmem:[#allocation2 + $0x68] sm:$0xf]
    %v79 = vld [vmem:[#allocation2 + $0x6c] sm:$0xf]
    %v80 = vld [vmem:[#allocation2 + $0x70] sm:$0xf]
    %v81 = vld [vmem:[#allocation2 + $0x74] sm:$0xf]
    %v82 = vld [vmem:[#allocation2 + $0x78] sm:$0xf]
    %v83 = vld [vmem:[#allocation2 + $0x7c] sm:$0xf]
    %v84 = vld [vmem:[%s2] sm:$0x1]
    %v86 = vlaneseq
    %v87 = vshrl.u32 %v86, 7
    %v88 = vsub.s32 0, %v87
    %v89 = vrot.slane %v84, %v88
    %v123 = vunpack.c.l.b16 %v52
    %v124 = vunpack.c.l.b16 %v53
    %v125 = vunpack.c.l.b16 %v54
    %v126 = vunpack.c.l.b16 %v55
    %v127 = vunpack.c.l.b16 %v56
    %v128 = vunpack.c.l.b16 %v57
    %v129 = vunpack.c.l.b16 %v58
    %v130 = vunpack.c.l.b16 %v59
    %v131 = vunpack.c.l.b16 %v60
    %v132 = vunpack.c.l.b16 %v61
    %v133 = vunpack.c.l.b16 %v62
    %v134 = vunpack.c.l.b16 %v63
    %v135 = vunpack.c.l.b16 %v64
    %v136 = vunpack.c.l.b16 %v65
    %v137 = vunpack.c.l.b16 %v66
    %v138 = vunpack.c.l.b16 %v67
    %v139 = vunpack.c.l.b16 %v68
    %v140 = vunpack.c.l.b16 %v69
    %v141 = vunpack.c.l.b16 %v70
    %v142 = vunpack.c.l.b16 %v71
    %v143 = vunpack.c.l.b16 %v72
    %v144 = vunpack.c.l.b16 %v73
    %v145 = vunpack.c.l.b16 %v74
    %v146 = vunpack.c.l.b16 %v75
    %v147 = vunpack.c.l.b16 %v76
    %v148 = vunpack.c.l.b16 %v77
    %v149 = vunpack.c.l.b16 %v78
    %v150 = vunpack.c.l.b16 %v79
    %v151 = vunpack.c.l.b16 %v80
    %v152 = vunpack.c.l.b16 %v81
    %v153 = vunpack.c.l.b16 %v82
    %v154 = vunpack.c.l.b16 %v83
    %v155 = vpack.c.b16 %v124, %v123
    %v156 = vpack.c.b16 %v126, %v125
    %v157 = vpack.c.b16 %v128, %v127
    %v158 = vpack.c.b16 %v130, %v129
    %v159 = vpack.c.b16 %v132, %v131
    %v160 = vpack.c.b16 %v134, %v133
    %v161 = vpack.c.b16 %v136, %v135
    %v162 = vpack.c.b16 %v138, %v137
    %v163 = vpack.c.b16 %v140, %v139
    %v164 = vpack.c.b16 %v142, %v141
    %v165 = vpack.c.b16 %v144, %v143
    %v166 = vpack.c.b16 %v146, %v145
    %v167 = vpack.c.b16 %v148, %v147
    %v168 = vpack.c.b16 %v150, %v149
    %v169 = vpack.c.b16 %v152, %v151
    %v170 = vpack.c.b16 %v154, %v153
    %187 = vmatprep.subr.bf16.mxu0 0
    %188 = vmatpush1.bf16.msra.mxu0 %v162
    %189 = vmatprep.subr.bf16.mxu0 0
    %190 = vmatpush1.bf16.msra.mxu0 %v161
    %191 = vmatprep.subr.bf16.mxu0 0
    %192 = vmatpush1.bf16.msra.mxu0 %v160
    %193 = vmatprep.subr.bf16.mxu0 0
    %194 = vmatpush1.bf16.msra.mxu0 %v159
    %195 = vmatprep.subr.bf16.mxu0 0
    %196 = vmatpush1.bf16.msra.mxu0 %v158
    %197 = vmatprep.subr.bf16.mxu0 0
    %198 = vmatpush1.bf16.msra.mxu0 %v157
    %199 = vmatprep.subr.bf16.mxu0 0
    %200 = vmatpush1.bf16.msra.mxu0 %v156
    %201 = vmatprep.subr.bf16.mxu0 0
    %202 = vmatpush1.bf16.msra.mxu0 %v155
    %203 = vmatprep.subr.bf16.mxu0 0
    %204 = vmatpush2.bf16.msra.mxu0 %v170
    %205 = vmatprep.subr.bf16.mxu0 0
    %206 = vmatpush2.bf16.msra.mxu0 %v169
    %207 = vmatprep.subr.bf16.mxu0 0
    %208 = vmatpush2.bf16.msra.mxu0 %v168
    %209 = vmatprep.subr.bf16.mxu0 0
    %210 = vmatpush2.bf16.msra.mxu0 %v167
    %211 = vmatprep.subr.bf16.mxu0 0
    %212 = vmatpush2.bf16.msra.mxu0 %v166
    %213 = vmatprep.subr.bf16.mxu0 0
    %214 = vmatpush2.bf16.msra.mxu0 %v165
    %215 = vmatprep.subr.bf16.mxu0 0
    %216 = vmatpush2.bf16.msra.mxu0 %v164
    %217 = vmatprep.subr.bf16.mxu0 0
    %218 = vmatpush2.bf16.msra.mxu0 %v163
    %219 = vmatprep.mubr.bf16.mxu0 %v51
    %220 = vmatmul.mubr.bf16.gmra.mxu0 %v50
    %v221 = vpop.f32.mrf.mxu0
    %v222 = vadd.f32 %v89, %v221
    %v223 = vpop.f32.mrf.mxu0
    %v224 = vpop.f32.mrf.mxu0
    %v225 = vpop.f32.mrf.mxu0
    %226 = vdwg.mxu0
    %v227 = vmax.f32 %v222, 0.0
    %v228 = vpack.c.bf16 %v227, %v227
    %v229 = vld [vmem:[%s3] sm:$0xf]
    %v230 = vld [vmem:[%s3 + $0x4] sm:$0xf]
    %v231 = vld [vmem:[%s3 + $0x8] sm:$0xf]
    %v232 = vld [vmem:[%s3 + $0xc] sm:$0xf]
    %v233 = vld [vmem:[%s3 + $0x10] sm:$0xf]
    %v234 = vld [vmem:[%s3 + $0x14] sm:$0xf]
    %v235 = vld [vmem:[%s3 + $0x18] sm:$0xf]
    %v236 = vld [vmem:[%s3 + $0x1c] sm:$0xf]
    %v237 = vld [vmem:[%s3 + $0x20] sm:$0xf]
    %v238 = vld [vmem:[%s3 + $0x24] sm:$0xf]
    %v239 = vld [vmem:[%s3 + $0x28] sm:$0xf]
    %v240 = vld [vmem:[%s3 + $0x2c] sm:$0xf]
    %v241 = vld [vmem:[%s3 + $0x30] sm:$0xf]
    %v242 = vld [vmem:[%s3 + $0x34] sm:$0xf]
    %v243 = vld [vmem:[%s3 + $0x38] sm:$0xf]
    %v244 = vld [vmem:[%s3 + $0x3c] sm:$0xf]
    %v245 = vld [vmem:[%s4] sm:$0x1]
    %v247 = vlaneseq
    %v248 = vshrl.u32 %v247, 7
    %v249 = vsub.s32 0, %v248
    %v250 = vrot.slane %v245, %v249
    %v268 = vunpack.c.l.b16 %v229
    %v269 = vunpack.c.l.b16 %v230
    %v270 = vunpack.c.l.b16 %v231
    %v271 = vunpack.c.l.b16 %v232
    %v272 = vunpack.c.l.b16 %v233
    %v273 = vunpack.c.l.b16 %v234
    %v274 = vunpack.c.l.b16 %v235
    %v275 = vunpack.c.l.b16 %v236
    %v276 = vunpack.c.l.b16 %v237
    %v277 = vunpack.c.l.b16 %v238
    %v278 = vunpack.c.l.b16 %v239
    %v279 = vunpack.c.l.b16 %v240
    %v280 = vunpack.c.l.b16 %v241
    %v281 = vunpack.c.l.b16 %v242
    %v282 = vunpack.c.l.b16 %v243
    %v283 = vunpack.c.l.b16 %v244
    %v284 = vpack.c.b16 %v269, %v268
    %v285 = vpack.c.b16 %v271, %v270
    %v286 = vpack.c.b16 %v273, %v272
    %v287 = vpack.c.b16 %v275, %v274
    %v288 = vpack.c.b16 %v277, %v276
    %v289 = vpack.c.b16 %v279, %v278
    %v290 = vpack.c.b16 %v281, %v280
    %v291 = vpack.c.b16 %v283, %v282
    %300 = vmatprep.subr.bf16.mxu0 0
    %301 = vmatpush1.bf16.msra.mxu0 %v291
    %302 = vmatprep.subr.bf16.mxu0 0
    %303 = vmatpush1.bf16.msra.mxu0 %v290
    %304 = vmatprep.subr.bf16.mxu0 0
    %305 = vmatpush1.bf16.msra.mxu0 %v289
    %306 = vmatprep.subr.bf16.mxu0 0
    %307 = vmatpush1.bf16.msra.mxu0 %v288
    %308 = vmatprep.subr.bf16.mxu0 0
    %309 = vmatpush1.bf16.msra.mxu0 %v287
    %310 = vmatprep.subr.bf16.mxu0 0
    %311 = vmatpush1.bf16.msra.mxu0 %v286
    %312 = vmatprep.subr.bf16.mxu0 0
    %313 = vmatpush1.bf16.msra.mxu0 %v285
    %314 = vmatprep.subr.bf16.mxu0 0
    %315 = vmatpush1.bf16.msra.mxu0 %v284
    %316 = vmatprep.subr.bf16.mxu0 0
    %317 = vmatpush2.bf16.msra.mxu0 0
    %318 = vmatprep.subr.bf16.mxu0 0
    %319 = vmatpush2.bf16.msra.mxu0 0
    %320 = vmatprep.subr.bf16.mxu0 0
    %321 = vmatpush2.bf16.msra.mxu0 0
    %322 = vmatprep.subr.bf16.mxu0 0
    %323 = vmatpush2.bf16.msra.mxu0 0
    %324 = vmatprep.subr.bf16.mxu0 0
    %325 = vmatpush2.bf16.msra.mxu0 0
    %326 = vmatprep.subr.bf16.mxu0 0
    %327 = vmatpush2.bf16.msra.mxu0 0
    %328 = vmatprep.subr.bf16.mxu0 0
    %329 = vmatpush2.bf16.msra.mxu0 0
    %330 = vmatprep.subr.bf16.mxu0 0
    %331 = vmatpush2.bf16.msra.mxu0 0
    %332 = vmatprep.mubr.bf16.mxu0 0
    %333 = vmatmul.mubr.bf16.gmra.mxu0 %v228
    %v334 = vpop.f32.mrf.mxu0
    %v335 = vadd.f32 %v250, %v334
    %v336 = vpop.f32.mrf.mxu0
    %v337 = vpop.f32.mrf.mxu0
    %v338 = vpop.f32.mrf.mxu0
    %339 = vdwg.mxu0
    %v340 = vmax.f32 %v335, 0.0
    %v341 = vpack.c.bf16 %v340, %v340
    %v342 = vld [vmem:[%s5] sm:$0xff]
    %v343 = vld [vmem:[%s5 + $0x8] sm:$0xff]
    %v344 = vld [vmem:[%s5 + $0x10] sm:$0xff]
    %v345 = vld [vmem:[%s5 + $0x18] sm:$0xff]
    %v346 = vld [vmem:[%s5 + $0x20] sm:$0xff]
    %v347 = vld [vmem:[%s5 + $0x28] sm:$0xff]
    %v348 = vld [vmem:[%s5 + $0x30] sm:$0xff]
    %v349 = vld [vmem:[%s5 + $0x38] sm:$0xff]
    %v350 = vld [vmem:[%s6] sm:$0x3]
    %v352 = vlaneseq
    %v353 = vshrl.u32 %v352, 7
    %v354 = vsub.s32 0, %v353
    %v355 = vrot.slane %v350, %v354
    %v356 = vlaneseq
    %v357 = vshrl.u32 %v356, 7
    %v358 = vsub.s32 1, %v357
    %v359 = vrot.slane %v350, %v358
    %v370 = vunpack.c.l.b16 %v342
    %v371 = vunpack.c.h.b16 %v342
    %v372 = vunpack.c.l.b16 %v343
    %v373 = vunpack.c.h.b16 %v343
    %v374 = vunpack.c.l.b16 %v344
    %v375 = vunpack.c.h.b16 %v344
    %v376 = vunpack.c.l.b16 %v345
    %v377 = vunpack.c.h.b16 %v345
    %v378 = vunpack.c.l.b16 %v346
    %v379 = vunpack.c.h.b16 %v346
    %v380 = vunpack.c.l.b16 %v347
    %v381 = vunpack.c.h.b16 %v347
    %v382 = vunpack.c.l.b16 %v348
    %v383 = vunpack.c.h.b16 %v348
    %v384 = vunpack.c.l.b16 %v349
    %v385 = vunpack.c.h.b16 %v349
    %v386 = vpack.c.b16 %v372, %v370
    %v387 = vpack.c.b16 %v373, %v371
    %v388 = vpack.c.b16 %v376, %v374
    %v389 = vpack.c.b16 %v377, %v375
    %v390 = vpack.c.b16 %v380, %v378
    %v391 = vpack.c.b16 %v381, %v379
    %v392 = vpack.c.b16 %v384, %v382
    %v393 = vpack.c.b16 %v385, %v383
    %vm402 = vcmask 523264
    %v404 = vsel %vm402, %v341, 0
    %406 = vmatprep.subr.bf16.mxu0 0
    %407 = vmatpush1.bf16.msra.mxu0 0
    %408 = vmatprep.subr.bf16.mxu0 0
    %409 = vmatpush1.bf16.msra.mxu0 0
    %410 = vmatprep.subr.bf16.mxu0 0
    %411 = vmatpush1.bf16.msra.mxu0 0
    %412 = vmatprep.subr.bf16.mxu0 0
    %413 = vmatpush1.bf16.msra.mxu0 0
    %414 = vmatprep.subr.bf16.mxu0 %v393
    %415 = vmatpush1.bf16.msra.mxu0 %v392
    %416 = vmatprep.subr.bf16.mxu0 %v391
    %417 = vmatpush1.bf16.msra.mxu0 %v390
    %418 = vmatprep.subr.bf16.mxu0 %v389
    %419 = vmatpush1.bf16.msra.mxu0 %v388
    %420 = vmatprep.subr.bf16.mxu0 %v387
    %421 = vmatpush1.bf16.msra.mxu0 %v386
    %422 = vmatprep.subr.bf16.mxu0 0
    %423 = vmatpush2.bf16.msra.mxu0 0
    %424 = vmatprep.subr.bf16.mxu0 0
    %425 = vmatpush2.bf16.msra.mxu0 0
    %426 = vmatprep.subr.bf16.mxu0 0
    %427 = vmatpush2.bf16.msra.mxu0 0
    %428 = vmatprep.subr.bf16.mxu0 0
    %429 = vmatpush2.bf16.msra.mxu0 0
    %430 = vmatprep.subr.bf16.mxu0 0
    %431 = vmatpush2.bf16.msra.mxu0 0
    %432 = vmatprep.subr.bf16.mxu0 0
    %433 = vmatpush2.bf16.msra.mxu0 0
    %434 = vmatprep.subr.bf16.mxu0 0
    %435 = vmatpush2.bf16.msra.mxu0 0
    %436 = vmatprep.subr.bf16.mxu0 0
    %437 = vmatpush2.bf16.msra.mxu0 0
    %438 = vmatprep.mubr.bf16.mxu0 0
    %439 = vmatmul.mubr.bf16.gmra.mxu0 %v404
    %v440 = vpop.f32.mrf.mxu0
    %v441 = vadd.f32 %v355, %v440
    %v442 = vpop.f32.mrf.mxu0
    %v443 = vadd.f32 %v359, %v442
    %v444 = vpop.f32.mrf.mxu0
    %v445 = vpop.f32.mrf.mxu0
    %446 = vdwg.mxu0
    %v447 = vmul.f32 %v443, 1.442695
    %v448 = vpow.pop %v447
    %v449 = vld [vmem:[%s7] sm:$0xff]
    %v450 = vmul.f32 %v448, %v449
    %v451 = vadd.f32 %v441, %v450
    %vm452 = vcmask 130048
    %453 = vst.msk [vmem:[#allocation6] sm:$0xff] %vm452, %v451
    %v454 = vmul.f32 %v448, %v448
    %v455 = vmul.f32 %v441, %v441
    %v456 = vadd.f32 %v454, %v455
    %v457 = vsub.f32 %v456, %v443
    %v458 = vsub.f32 %v457, 0.5
    %v459 = vsel %vm452, %v458, 0.0
    %460 = vadd.xlane.f32.xlu0 %v459
    %v461 = vpop.xlane.xlu0 %460
    %vm462 = vcmask 7168
    %v463 = vsel %vm462, %v461, 0.0
    %464 = vadd.xlane.f32.xlu0 %v463
    %v465 = vpop.xlane.xlu0 %464
    %v466 = vrot.slane %v465, 4
    %v467 = vadd.f32 %v465, %v466
    %v468 = vrot.slane %v467, 2
    %v469 = vadd.f32 %v467, %v468
    %v470 = vrot.slane %v469, 1
    %v471 = vadd.f32 %v469, %v470
    %s472 = vtos %v471
    %s473 = scalar_lea.smem [#allocation7], 0
    %474 = sst [smem:[%s473]] %s472
    // Predicated region
    $region38: #{tpu_custom_call.1} parent=1 // pred_check
      _
    $region39: #{tpu_custom_call.1} parent=1 // pred_check_branch
      %476 = sbr.rel (0) target = $region41
    $region40: #{tpu_custom_call.1} parent=1 // pred_region
      %s478 = ssub.s32 128, 128
      %479 = vsyncadd [#allocation4], %s478
      %s481 = sshll.u32 [#allocation6], 4
      %s482 = int_to_ptr.vmem [resolvable:$true] %s481
      %484 = dma.vmem_to_hbm [thread:$0]  %s482, 128, %s8, [#allocation4]
    $region41: #{tpu_custom_call.1} parent=1 // pred_fallthru
      _
    // Predicated region
    $region42: #{tpu_custom_call.1} parent=1 // pred_check
      _
    $region43: #{tpu_custom_call.1} parent=1 // pred_check_branch
      %486 = sbr.rel (0) target = $region45
    $region44: #{tpu_custom_call.1} parent=1 // pred_region
      %s488 = ssub.s32 16, 16
      %489 = vsyncadd [#allocation5], %s488
      %492 = dma.smem_to_hbm [#allocation7], 16, %s9, [#allocation5]
    $region45: #{tpu_custom_call.1} parent=1 // pred_fallthru
      _
    // Predicated region
    $region46: #{tpu_custom_call.1} parent=1 // pred_check
      _
    $region47: #{tpu_custom_call.1} parent=1 // pred_check_branch
      %494 = sbr.rel (0) target = $region49
    $region48: #{tpu_custom_call.1} parent=1 // pred_region
      %495 = dma.done [#allocation4], 128
    $region49: #{tpu_custom_call.1} parent=1 // pred_fallthru
      _
    // Predicated region
    $region50: #{tpu_custom_call.1} parent=1 // pred_check
      _
    $region51: #{tpu_custom_call.1} parent=1 // pred_check_branch
      %497 = sbr.rel (0) target = $region53
    $region52: #{tpu_custom_call.1} parent=1 // pred_region
      %498 = dma.done [#allocation5], 16
    $region53: #{tpu_custom_call.1} parent=1 // pred_fallthru
      _
    %499 = sfence
    %500 = vsyncpa [#allocation3], 1
    %501 = vsyncpa [#allocation4], 1
    %502 = vsyncpa [#allocation5], 1

</llo_original>
